<compile_context>
chip_gen: v6e
topology: v6e:2x2x1
jax: 0.10.0
libtpu: 0.0.40
codegen_flags: <defaults>
</compile_context>

<pallas_src>
import math
import jax
import jax.numpy as jnp
from jax.experimental import pallas as pl
from jax.experimental.pallas import tpu as pltpu

LEAKY_SLOPE = 0.01   # nn.LeakyReLU default
BN_EPS = 1e-5        # nn.BatchNorm1d default


# ---------------------------------------------------------------------------
# Kernel
# ---------------------------------------------------------------------------
def _mlp_kernel(n_hidden, out_dim):
    """refs layout: clamp(SMEM), x, (w_i, b_i) x n_hidden, w_out, b_out, o_ref."""

    def kernel(*refs):
        clamp_ref, x_ref = refs[0], refs[1]
        layer_refs = refs[2:-1]
        o_ref = refs[-1]

        x = x_ref[...]                          # (B, in_dim) f32, native layout
        inv_n = 1.0 / x.shape[0]                # static true batch size

        h = x
        for i in range(n_hidden):
            w = layer_refs[2 * i][...]          # (out_f, in_f)
            b = layer_refs[2 * i + 1][...]      # (out_f, 1)
            if i == 0:
                # Contract over x's feature dim directly:
                # (out_f, in) x (B, in) -> lane-dense (out_f, B) on the MXU.
                h = jax.lax.dot_general(
                    w, h, (((1,), (1,)), ((), ())),
                    preferred_element_type=jnp.float32) + b
            else:
                h = jnp.dot(w, h, preferred_element_type=jnp.float32) + b
            # LeakyReLU: mul + max (2 VALU ops).
            h = jnp.maximum(h, LEAKY_SLOPE * h)
            # BatchNorm1d training mode, single-pass batch statistics:
            # two independent lane reductions (XLU), biased variance.
            mean = jnp.sum(h, axis=1, keepdims=True) * inv_n
            mean_sq = jnp.sum(h * h, axis=1, keepdims=True) * inv_n
            var = mean_sq - mean * mean
            h = (h - mean) * jax.lax.rsqrt(var + BN_EPS)   # rsqrt -> EUP (free slot)
            # gamma/beta were folded into the next layer's weights host-side.

        w_out = layer_refs[2 * n_hidden][...]
        b_out = layer_refs[2 * n_hidden + 1][...]           # (out_dim, 1)
        if out_dim == 1:
            # VPU multiply + sublane reduce instead of a 1-row MXU pass.
            out = jnp.sum(h * w_out, axis=0, keepdims=True) + b_out   # (1, B)
        else:
            out = jnp.dot(w_out, h, preferred_element_type=jnp.float32) + b_out
        out = jnp.clip(out, clamp_ref[0], clamp_ref[1])     # CustomClampLayer
        o_ref[...] = out                                    # lane-dense store

    return kernel


# ---------------------------------------------------------------------------
# Wrapper
# ---------------------------------------------------------------------------
def neural_network_forward(x, kernel_params, *, min_out=0.0, max_out=1.0):
    """x: (B, in_dim) float32.  kernel_params: flat list from prepare_params()."""
    x = jnp.asarray(x, jnp.float32)
    B, in_dim = x.shape
    n_hidden = (len(kernel_params) - 2) // 2
    out_dim = kernel_params[-1].shape[0]

    clamp = jnp.array([min_out, max_out], dtype=jnp.float32)

    # --- cost estimate + VMEM budget (sized from the actual buffers) ----------
    flops = 0
    transcendentals = 0
    param_bytes = 0
    max_h = 1
    for i in range(n_hidden):
        w = kernel_params[2 * i]
        of, inf = w.shape
        max_h = max(max_h, of)
        flops += 2 * B * of * inf + 8 * B * of          # matmul + LeakyReLU/BN VPU work
        transcendentals += of                           # one rsqrt per feature
        param_bytes += 4 * (w.size + of)
    w_out = kernel_params[2 * n_hidden]
    flops += 2 * B * int(w_out.size) + 2 * B * out_dim
    param_bytes += 4 * (int(w_out.size) + out_dim)
    io_bytes = 4 * B * (in_dim + out_dim)

    # x + ~3 live full-width activation temporaries + output + params (w/ margin).
    vmem_needed = 4 * B * (in_dim + 3 * max_h + out_dim) + 2 * param_bytes + (1 << 20)
    vmem_limit = int(min(max(2 * vmem_needed, 16 << 20), 100 << 20))

    smem = pl.BlockSpec(memory_space=pltpu.MemorySpace.SMEM)
    vmem = pl.BlockSpec(memory_space=pltpu.MemorySpace.VMEM)
    args = (clamp, x, *kernel_params)

    out = pl.pallas_call(
        _mlp_kernel(n_hidden, out_dim),
        out_shape=jax.ShapeDtypeStruct((out_dim, B), jnp.float32),
        in_specs=[smem] + [vmem] * (len(args) - 1),
        out_specs=vmem,
        compiler_params=pltpu.CompilerParams(vmem_limit_bytes=vmem_limit),
        cost_estimate=pl.CostEstimate(flops=flops,
                                      transcendentals=transcendentals,
                                      bytes_accessed=io_bytes + param_bytes),
    )(*args)
    return out.T                                        # back to (B, out_dim)


# ---------------------------------------------------------------------------
# Parameters: PyTorch-faithful init + host-side constant folding
# ---------------------------------------------------------------------------
def init_raw_params(key, in_dim, hidden_dims, out_dim=1):
    """Matches nn_initialization: hidden Linear -> kaiming_uniform (fan_in,
    leaky_relu gain), final Linear -> xavier_uniform (gain 1), all biases 0,
    BatchNorm gamma=1, beta=0.  Weights kept in PyTorch (out, in) layout."""
    raw = {}
    dims = [in_dim] + list(hidden_dims)
    keys = jax.random.split(key, len(hidden_dims) + 1)
    gain = math.sqrt(2.0 / (1.0 + LEAKY_SLOPE ** 2))
    for i in range(len(hidden_dims)):
        fan_in, fan_out = dims[i], dims[i + 1]
        bound = gain * math.sqrt(3.0 / fan_in)
        raw[f"W{i+1}"] = jax.random.uniform(keys[i], (fan_out, fan_in),
                                            minval=-bound, maxval=bound,
                                            dtype=jnp.float32)
        raw[f"b{i+1}"] = jnp.zeros((fan_out,), jnp.float32)
        raw[f"g{i+1}"] = jnp.ones((fan_out,), jnp.float32)
        raw[f"be{i+1}"] = jnp.zeros((fan_out,), jnp.float32)
    fan_in, fan_out = hidden_dims[-1], out_dim
    bound = math.sqrt(6.0 / (fan_in + fan_out))
    raw[f"W{len(hidden_dims)+1}"] = jax.random.uniform(
        keys[-1], (fan_out, fan_in), minval=-bound, maxval=bound, dtype=jnp.float32)
    raw[f"b{len(hidden_dims)+1}"] = jnp.zeros((fan_out,), jnp.float32)
    return raw


def prepare_params(raw, n_hidden, out_dim):
    """One-time host-side fold of BN affine (gamma_i, beta_i) into Linear i+1:
       W' = W * gamma_prev[None,:],  b' = W @ beta_prev + b.
    Returns flat kernel args [w1,b1,...,w_out,b_out] in kernel layouts."""
    flat = []
    for i in range(n_hidden):
        W = raw[f"W{i+1}"]
        b = raw[f"b{i+1}"]
        if i > 0:
            b = W @ raw[f"be{i}"] + b
            W = W * raw[f"g{i}"][None, :]
        flat.append(W.astype(jnp.float32))                     # (out_f, in_f)
        flat.append(b.reshape(-1, 1).astype(jnp.float32))      # (out_f, 1)
    W = raw[f"W{n_hidden+1}"]
    b = raw[f"b{n_hidden+1}"]
    b = W @ raw[f"be{n_hidden}"] + b
    W = W * raw[f"g{n_hidden}"][None, :]
    if out_dim == 1:
        flat.append(W.reshape(-1, 1).astype(jnp.float32))      # (hidden_last, 1)
    else:
        flat.append(W.astype(jnp.float32))                     # (out_dim, hidden_last)
    flat.append(b.reshape(-1, 1).astype(jnp.float32))          # (out_dim, 1)
    return flat


# ---------------------------------------------------------------------------
# Self-test
# ---------------------------------------------------------------------------
if __name__ == "__main__":
    IN_DIM, HIDDEN, OUT_DIM = 16, [32, 32], 1

    key = jax.random.PRNGKey(0)
    k_p, k_g, k_be, k_x1, k_x2 = jax.random.split(key, 5)

    raw = init_raw_params(k_p, IN_DIM, HIDDEN, OUT_DIM)
    # Give BN non-trivial affine params (as after training) so the host-side
    # fold is actually exercised; module init would be gamma=1, beta=0.
    for i in range(len(HIDDEN)):
        d = HIDDEN[i]
        raw[f"g{i+1}"] = 1.0 + 0.1 * jax.random.uniform(
            jax.random.fold_in(k_g, i), (d,), dtype=jnp.float32)
        raw[f"be{i+1}"] = 0.05 * jax.random.normal(
            jax.random.fold_in(k_be, i), (d,), dtype=jnp.float32)

    kparams = prepare_params(raw, len(HIDDEN), OUT_DIM)

    def ref(x):
        h = x
        for i in range(len(HIDDEN)):
            h = h @ raw[f"W{i+1}"].T + raw[f"b{i+1}"]
            h = jnp.where(h >= 0, h, LEAKY_SLOPE * h)
            m = jnp.mean(h, axis=0, keepdims=True)
            v = jnp.mean((h - m) ** 2, axis=0, keepdims=True)
            h = (h - m) / jnp.sqrt(v + BN_EPS) * raw[f"g{i+1}"] + raw[f"be{i+1}"]
        o = h @ raw[f"W{len(HIDDEN)+1}"].T + raw[f"b{len(HIDDEN)+1}"]
        return jnp.clip(o, 0.0, 1.0)

    # B=128 exercises the lane-aligned path, B=77 the non-multiple-of-128 path.
    for B, kx in ((128, k_x1), (77, k_x2)):
        x = jax.random.normal(kx, (B, IN_DIM), dtype=jnp.float32)
        out = jax.block_until_ready(
            neural_network_forward(x, kparams, min_out=0.0, max_out=1.0))
        exp = ref(x)
        assert out.shape == (B, OUT_DIM)
        err = float(jnp.max(jnp.abs(out - exp)))
        assert jnp.allclose(out, exp, atol=3e-5, rtol=1e-4), \
            f"mismatch at B={B}: max abs err {err}"

    print("KERNEL_OK")
</pallas_src>

<mosaic_0001>
module attributes {stable_mosaic.version = 11 : i64} {
  func.func @kernel(%arg0: memref<2xf32, #tpu.memory_space<smem>>, %arg1: memref<128x16xf32, #tpu.memory_space<vmem>>, %arg2: memref<32x16xf32, #tpu.memory_space<vmem>>, %arg3: memref<32x1xf32, #tpu.memory_space<vmem>>, %arg4: memref<32x32xf32, #tpu.memory_space<vmem>>, %arg5: memref<32x1xf32, #tpu.memory_space<vmem>>, %arg6: memref<32x1xf32, #tpu.memory_space<vmem>>, %arg7: memref<1x1xf32, #tpu.memory_space<vmem>>, %arg8: memref<1x128xf32, #tpu.memory_space<vmem>>) attributes {dimension_semantics = [], scalar_prefetch = 0 : i64, scratch_operands = 0 : i64, tpu.core_type = #tpu.core_type<tc>} {
    %c0 = arith.constant 0 : index
    %c0_0 = arith.constant 0 : index
    %0 = vector.load %arg1[%c0, %c0_0] : memref<128x16xf32, #tpu.memory_space<vmem>>, vector<128x16xf32>
    %c0_1 = arith.constant 0 : index
    %c0_2 = arith.constant 0 : index
    %1 = vector.load %arg2[%c0_1, %c0_2] : memref<32x16xf32, #tpu.memory_space<vmem>>, vector<32x16xf32>
    %c0_3 = arith.constant 0 : index
    %c0_4 = arith.constant 0 : index
    %2 = vector.load %arg3[%c0_3, %c0_4] : memref<32x1xf32, #tpu.memory_space<vmem>>, vector<32x1xf32>
    %cst = arith.constant dense<0.000000e+00> : vector<32x128xf32>
    %3 = tpu.matmul %1, %0, %cst {dimension_numbers = #tpu.dot_dimension_numbers<[1], [1], [0], [0], [0, 0, 1, 0], [], []>} : vector<32x16xf32>, vector<128x16xf32>, vector<32x128xf32> -> vector<32x128xf32>
    %4 = vector.broadcast %2 : vector<32x1xf32> to vector<32x128xf32>
    %5 = arith.addf %3, %4 : vector<32x128xf32>
    %cst_5 = arith.constant 0.00999999977 : f32
    %6 = vector.broadcast %cst_5 : f32 to vector<32x128xf32>
    %7 = arith.mulf %6, %5 : vector<32x128xf32>
    %8 = arith.maximumf %5, %7 : vector<32x128xf32>
    %cst_6 = arith.constant dense<0.000000e+00> : vector<32xf32>
    %9 = vector.multi_reduction <add>, %8, %cst_6 [1] : vector<32x128xf32> to vector<32xf32>
    %10 = vector.shape_cast %9 : vector<32xf32> to vector<32x1xf32>
    %cst_7 = arith.constant 7.812500e-03 : f32
    %11 = vector.broadcast %cst_7 : f32 to vector<32x1xf32>
    %12 = arith.mulf %10, %11 : vector<32x1xf32>
    %13 = arith.mulf %8, %8 : vector<32x128xf32>
    %cst_8 = arith.constant dense<0.000000e+00> : vector<32xf32>
    %14 = vector.multi_reduction <add>, %13, %cst_8 [1] : vector<32x128xf32> to vector<32xf32>
    %15 = vector.shape_cast %14 : vector<32xf32> to vector<32x1xf32>
    %cst_9 = arith.constant 7.812500e-03 : f32
    %16 = vector.broadcast %cst_9 : f32 to vector<32x1xf32>
    %17 = arith.mulf %15, %16 : vector<32x1xf32>
    %18 = arith.mulf %12, %12 : vector<32x1xf32>
    %19 = arith.subf %17, %18 : vector<32x1xf32>
    %20 = vector.broadcast %12 : vector<32x1xf32> to vector<32x128xf32>
    %21 = arith.subf %8, %20 : vector<32x128xf32>
    %cst_10 = arith.constant 9.99999974E-6 : f32
    %22 = vector.broadcast %cst_10 : f32 to vector<32x1xf32>
    %23 = arith.addf %19, %22 : vector<32x1xf32>
    %24 = math.rsqrt %23 : vector<32x1xf32>
    %25 = vector.broadcast %24 : vector<32x1xf32> to vector<32x128xf32>
    %26 = arith.mulf %21, %25 : vector<32x128xf32>
    %c0_11 = arith.constant 0 : index
    %c0_12 = arith.constant 0 : index
    %27 = vector.load %arg4[%c0_11, %c0_12] : memref<32x32xf32, #tpu.memory_space<vmem>>, vector<32x32xf32>
    %c0_13 = arith.constant 0 : index
    %c0_14 = arith.constant 0 : index
    %28 = vector.load %arg5[%c0_13, %c0_14] : memref<32x1xf32, #tpu.memory_space<vmem>>, vector<32x1xf32>
    %cst_15 = arith.constant dense<0.000000e+00> : vector<32x128xf32>
    %29 = tpu.matmul %27, %26, %cst_15 {dimension_numbers = #tpu.dot_dimension_numbers<[1], [0], [0], [1], [0, 0, 1, 1], [], []>} : vector<32x32xf32>, vector<32x128xf32>, vector<32x128xf32> -> vector<32x128xf32>
    %30 = vector.broadcast %28 : vector<32x1xf32> to vector<32x128xf32>
    %31 = arith.addf %29, %30 : vector<32x128xf32>
    %cst_16 = arith.constant 0.00999999977 : f32
    %32 = vector.broadcast %cst_16 : f32 to vector<32x128xf32>
    %33 = arith.mulf %32, %31 : vector<32x128xf32>
    %34 = arith.maximumf %31, %33 : vector<32x128xf32>
    %cst_17 = arith.constant dense<0.000000e+00> : vector<32xf32>
    %35 = vector.multi_reduction <add>, %34, %cst_17 [1] : vector<32x128xf32> to vector<32xf32>
    %36 = vector.shape_cast %35 : vector<32xf32> to vector<32x1xf32>
    %cst_18 = arith.constant 7.812500e-03 : f32
    %37 = vector.broadcast %cst_18 : f32 to vector<32x1xf32>
    %38 = arith.mulf %36, %37 : vector<32x1xf32>
    %39 = arith.mulf %34, %34 : vector<32x128xf32>
    %cst_19 = arith.constant dense<0.000000e+00> : vector<32xf32>
    %40 = vector.multi_reduction <add>, %39, %cst_19 [1] : vector<32x128xf32> to vector<32xf32>
    %41 = vector.shape_cast %40 : vector<32xf32> to vector<32x1xf32>
    %cst_20 = arith.constant 7.812500e-03 : f32
    %42 = vector.broadcast %cst_20 : f32 to vector<32x1xf32>
    %43 = arith.mulf %41, %42 : vector<32x1xf32>
    %44 = arith.mulf %38, %38 : vector<32x1xf32>
    %45 = arith.subf %43, %44 : vector<32x1xf32>
    %46 = vector.broadcast %38 : vector<32x1xf32> to vector<32x128xf32>
    %47 = arith.subf %34, %46 : vector<32x128xf32>
    %cst_21 = arith.constant 9.99999974E-6 : f32
    %48 = vector.broadcast %cst_21 : f32 to vector<32x1xf32>
    %49 = arith.addf %45, %48 : vector<32x1xf32>
    %50 = math.rsqrt %49 : vector<32x1xf32>
    %51 = vector.broadcast %50 : vector<32x1xf32> to vector<32x128xf32>
    %52 = arith.mulf %47, %51 : vector<32x128xf32>
    %c0_22 = arith.constant 0 : index
    %c0_23 = arith.constant 0 : index
    %53 = vector.load %arg6[%c0_22, %c0_23] : memref<32x1xf32, #tpu.memory_space<vmem>>, vector<32x1xf32>
    %c0_24 = arith.constant 0 : index
    %c0_25 = arith.constant 0 : index
    %54 = vector.load %arg7[%c0_24, %c0_25] : memref<1x1xf32, #tpu.memory_space<vmem>>, vector<1x1xf32>
    %55 = vector.broadcast %53 : vector<32x1xf32> to vector<32x128xf32>
    %56 = arith.mulf %52, %55 : vector<32x128xf32>
    %cst_26 = arith.constant dense<0.000000e+00> : vector<128xf32>
    %57 = vector.multi_reduction <add>, %56, %cst_26 [0] : vector<32x128xf32> to vector<128xf32>
    %58 = vector.shape_cast %57 : vector<128xf32> to vector<1x128xf32>
    %59 = vector.broadcast %54 : vector<1x1xf32> to vector<1x128xf32>
    %60 = arith.addf %58, %59 : vector<1x128xf32>
    %c0_27 = arith.constant 0 : index
    %61 = memref.load %arg0[%c0_27] : memref<2xf32, #tpu.memory_space<smem>>
    %c1 = arith.constant 1 : index
    %62 = memref.load %arg0[%c1] : memref<2xf32, #tpu.memory_space<smem>>
    %63 = vector.broadcast %61 : f32 to vector<1x128xf32>
    %64 = arith.maximumf %63, %60 : vector<1x128xf32>
    %65 = vector.broadcast %62 : f32 to vector<1x128xf32>
    %66 = arith.minimumf %65, %64 : vector<1x128xf32>
    %c0_28 = arith.constant 0 : index
    %c0_29 = arith.constant 0 : index
    %67 = vector.load %arg8[%c0_28, %c0_29] : memref<1x128xf32, #tpu.memory_space<vmem>>, vector<1x128xf32>
    tpu.vector_store %arg8[%c0_28, %c0_29], %66 {strides = array<i32>} : memref<1x128xf32, #tpu.memory_space<vmem>>, vector<1x128xf32>,
    return
  }
}

</mosaic_0001>

<llo_original>
// kernel: tpu_custom_call.1
$region0: #{tpu_custom_call.1}
  #allocation0 [shape = 'u32[]', space=smem, size = 0x4, offset = 0x4, fixed_abs, tag = 'smem constant byte address 0x4 - core index']
  #allocation1 [shape = 'u32[144,128]{1,0:T(1,128)}', space=vmem, size = 0x12000, scoped, tag = 'internal scratch']
  #allocation2 [shape = 'f32[1,1]{1,0:T(1,128)S(1)}', space=vmem, size = 0x200, scoped, tag = 'scoped memory for tpu_custom_call.1']
  %s0 = inlined_call_operand.vmem [shape: f32[2], index: 0, kind: input, shape index: {}]
  %s1 = inlined_call_operand.vmem [shape: f32[128,16], index: 1, kind: input, shape index: {}]
  %s2 = inlined_call_operand.vmem [shape: f32[32,16], index: 2, kind: input, shape index: {}]
  %s3 = inlined_call_operand.vmem [shape: f32[32,1], index: 3, kind: input, shape index: {}]
  %s4 = inlined_call_operand.vmem [shape: f32[32,32], index: 4, kind: input, shape index: {}]
  %s5 = inlined_call_operand.vmem [shape: f32[32,1], index: 5, kind: input, shape index: {}]
  %s6 = inlined_call_operand.vmem [shape: f32[32,1], index: 6, kind: input, shape index: {}]
  %s7 = inlined_call_operand.<no memory space> [shape: f32[1,1], index: 7, kind: input, shape index: {}]
  %s8 = inlined_call_operand.hbm [shape: f32[1,128], index: 8, kind: output, shape index: {}]
  %s9 = sld [smem:[#allocation0]]
  $region46: #{tpu_custom_call.1} parent=0
    _
  %s11 = ssub.s32 1, %s9
  %s12 = scalar_select 0, %s11, %s9
  %v13 = vstv %s7
  %14 = vst [vmem:[#allocation2] sm:$0x1] %v13
  $region1: #{tpu_custom_call.1} parent=0
    #allocation3 [shape = 'u8[512]{0}', space=smem, size = 0x200, scoped, tag = 'input window, operand 0, single buffered']
    #allocation4 [shape = 's32[1]{0}', space=sflag, size = 0x4, scoped, tag = 'scoped memory for tpu_custom_call.1']
    #allocation5 [shape = 's32[1]{0}', space=sflag, size = 0x4, scoped, tag = 'scoped memory for tpu_custom_call.1']
    #allocation6 [shape = 'u8[512]{0}', space=vmem, size = 0x400, scoped, tag = 'output window, operand 0, single buffered']
    %15 = vsyncpa [#allocation5], 0
    %16 = vsyncpa [#allocation4], 0
    // Predicated region
    $region2: #{tpu_custom_call.1} parent=1 // pred_check
      _
    $region3: #{tpu_custom_call.1} parent=1 // pred_check_branch
      %18 = sbr.rel (0) target = $region5
    $region4: #{tpu_custom_call.1} parent=1 // pred_region
      %s20 = ssub.s32 16, 16
      %21 = vsyncadd [#allocation5], %s20
      %s23 = sshll.u32 %s0, 4
      %s24 = int_to_ptr.vmem [resolvable:$true] %s23
      %26 = dma.vmem_to_smem %s24, 16, [#allocation3], [#allocation5]
    $region5: #{tpu_custom_call.1} parent=1 // pred_fallthru
      _
    // Predicated region
    $region6: #{tpu_custom_call.1} parent=1 // pred_check
      _
    $region7: #{tpu_custom_call.1} parent=1 // pred_check_branch
      %28 = sbr.rel (0) target = $region9
    $region8: #{tpu_custom_call.1} parent=1 // pred_region
      _
    $region9: #{tpu_custom_call.1} parent=1 // pred_fallthru
      _
    // Predicated region
    $region10: #{tpu_custom_call.1} parent=1 // pred_check
      _
    $region11: #{tpu_custom_call.1} parent=1 // pred_check_branch
      %30 = sbr.rel (0) target = $region13
    $region12: #{tpu_custom_call.1} parent=1 // pred_region
      _
    $region13: #{tpu_custom_call.1} parent=1 // pred_fallthru
      _
    // Predicated region
    $region14: #{tpu_custom_call.1} parent=1 // pred_check
      _
    $region15: #{tpu_custom_call.1} parent=1 // pred_check_branch
      %32 = sbr.rel (0) target = $region17
    $region16: #{tpu_custom_call.1} parent=1 // pred_region
      _
    $region17: #{tpu_custom_call.1} parent=1 // pred_fallthru
      _
    // Predicated region
    $region18: #{tpu_custom_call.1} parent=1 // pred_check
      _
    $region19: #{tpu_custom_call.1} parent=1 // pred_check_branch
      %34 = sbr.rel (0) target = $region21
    $region20: #{tpu_custom_call.1} parent=1 // pred_region
      _
    $region21: #{tpu_custom_call.1} parent=1 // pred_fallthru
      _
    // Predicated region
    $region22: #{tpu_custom_call.1} parent=1 // pred_check
      _
    $region23: #{tpu_custom_call.1} parent=1 // pred_check_branch
      %36 = sbr.rel (0) target = $region25
    $region24: #{tpu_custom_call.1} parent=1 // pred_region
      _
    $region25: #{tpu_custom_call.1} parent=1 // pred_fallthru
      _
    // Predicated region
    $region26: #{tpu_custom_call.1} parent=1 // pred_check
      _
    $region27: #{tpu_custom_call.1} parent=1 // pred_check_branch
      %38 = sbr.rel (0) target = $region29
    $region28: #{tpu_custom_call.1} parent=1 // pred_region
      _
    $region29: #{tpu_custom_call.1} parent=1 // pred_fallthru
      _
    // Predicated region
    $region30: #{tpu_custom_call.1} parent=1 // pred_check
      _
    $region31: #{tpu_custom_call.1} parent=1 // pred_check_branch
      %40 = sbr.rel (0) target = $region33
    $region32: #{tpu_custom_call.1} parent=1 // pred_region
      _
    $region33: #{tpu_custom_call.1} parent=1 // pred_fallthru
      _
    // Predicated region
    $region34: #{tpu_custom_call.1} parent=1 // pred_check
      _
    $region35: #{tpu_custom_call.1} parent=1 // pred_check_branch
      %42 = sbr.rel (0) target = $region37
    $region36: #{tpu_custom_call.1} parent=1 // pred_region
      %43 = dma.done [#allocation5], 16
    $region37: #{tpu_custom_call.1} parent=1 // pred_fallthru
      _
    %44 = sfence
    %v45 = vld [vmem:[%s1] sm:$0xff]
    %v46 = vld [vmem:[%s1 + $0x8] sm:$0xff]
    %v47 = vld [vmem:[%s1 + $0x10] sm:$0xff]
    %v48 = vld [vmem:[%s1 + $0x18] sm:$0xff]
    %v49 = vld [vmem:[%s1 + $0x20] sm:$0xff]
    %v50 = vld [vmem:[%s1 + $0x28] sm:$0xff]
    %v51 = vld [vmem:[%s1 + $0x30] sm:$0xff]
    %v52 = vld [vmem:[%s1 + $0x38] sm:$0xff]
    %v53 = vld [vmem:[%s1 + $0x40] sm:$0xff]
    %v54 = vld [vmem:[%s1 + $0x48] sm:$0xff]
    %v55 = vld [vmem:[%s1 + $0x50] sm:$0xff]
    %v56 = vld [vmem:[%s1 + $0x58] sm:$0xff]
    %v57 = vld [vmem:[%s1 + $0x60] sm:$0xff]
    %v58 = vld [vmem:[%s1 + $0x68] sm:$0xff]
    %v59 = vld [vmem:[%s1 + $0x70] sm:$0xff]
    %v60 = vld [vmem:[%s1 + $0x78] sm:$0xff]
    %v61 = vld [vmem:[%s2] sm:$0xff]
    %v62 = vld [vmem:[%s2 + $0x8] sm:$0xff]
    %v63 = vld [vmem:[%s2 + $0x10] sm:$0xff]
    %v64 = vld [vmem:[%s2 + $0x18] sm:$0xff]
    %v65 = vld [vmem:[%s3] sm:$0xff]
    %v66 = vld [vmem:[%s3 + $0x8] sm:$0xff]
    %v67 = vld [vmem:[%s3 + $0x10] sm:$0xff]
    %v68 = vld [vmem:[%s3 + $0x18] sm:$0xff]
    %70 = vset.pattern.permute.xlu0 0
    %71 = vperm.xlu0 %70, %v65
    %v72 = vpop.permute.xlu0 %71
    %75 = vset.pattern.permute.xlu0 0
    %76 = vperm.xlu0 %75, %v66
    %v77 = vpop.permute.xlu0 %76
    %80 = vset.pattern.permute.xlu0 0
    %81 = vperm.xlu0 %80, %v67
    %v82 = vpop.permute.xlu0 %81
    %85 = vset.pattern.permute.xlu0 0
    %86 = vperm.xlu0 %85, %v68
    %v87 = vpop.permute.xlu0 %86
    %vm89 = vcmask 130048
    %v91 = vsel %vm89, %v61, 0
    %v94 = vsel %vm89, %v62, 0
    %v97 = vsel %vm89, %v63, 0
    %v100 = vsel %vm89, %v64, 0
    %v103 = vsel %vm89, %v45, 0
    %v106 = vsel %vm89, %v46, 0
    %v109 = vsel %vm89, %v47, 0
    %v112 = vsel %vm89, %v48, 0
    %v115 = vsel %vm89, %v49, 0
    %v118 = vsel %vm89, %v50, 0
    %v121 = vsel %vm89, %v51, 0
    %v124 = vsel %vm89, %v52, 0
    %v127 = vsel %vm89, %v53, 0
    %v130 = vsel %vm89, %v54, 0
    %v133 = vsel %vm89, %v55, 0
    %v136 = vsel %vm89, %v56, 0
    %v139 = vsel %vm89, %v57, 0
    %v142 = vsel %vm89, %v58, 0
    %v145 = vsel %vm89, %v59, 0
    %v148 = vsel %vm89, %v60, 0
    %150 = vmatprep.subr.mxu0 0.0
    %151 = vmatpush1.xpose.msra.mxu0 %v148
    %152 = vmatprep.subr.mxu0 0.0
    %153 = vmatpush1.xpose.msra.mxu0 %v145
    %154 = vmatprep.subr.mxu0 0.0
    %155 = vmatpush1.xpose.msra.mxu0 %v142
    %156 = vmatprep.subr.mxu0 0.0
    %157 = vmatpush1.xpose.msra.mxu0 %v139
    %158 = vmatprep.subr.mxu0 0.0
    %159 = vmatpush1.xpose.msra.mxu0 %v136
    %160 = vmatprep.subr.mxu0 0.0
    %161 = vmatpush1.xpose.msra.mxu0 %v133
    %162 = vmatprep.subr.mxu0 0.0
    %163 = vmatpush1.xpose.msra.mxu0 %v130
    %164 = vmatprep.subr.mxu0 0.0
    %165 = vmatpush1.xpose.msra.mxu0 %v127
    %166 = vmatprep.subr.mxu0 0.0
    %167 = vmatpush1.xpose.msra.mxu0 %v124
    %168 = vmatprep.subr.mxu0 0.0
    %169 = vmatpush1.xpose.msra.mxu0 %v121
    %170 = vmatprep.subr.mxu0 0.0
    %171 = vmatpush1.xpose.msra.mxu0 %v118
    %172 = vmatprep.subr.mxu0 0.0
    %173 = vmatpush1.xpose.msra.mxu0 %v115
    %174 = vmatprep.subr.mxu0 0.0
    %175 = vmatpush1.xpose.msra.mxu0 %v112
    %176 = vmatprep.subr.mxu0 0.0
    %177 = vmatpush1.xpose.msra.mxu0 %v109
    %178 = vmatprep.subr.mxu0 0.0
    %179 = vmatpush1.xpose.msra.mxu0 %v106
    %180 = vmatprep.subr.mxu0 0.0
    %181 = vmatpush1.xpose.msra.mxu0 %v103
    %182 = vmatprep.subr.mxu0 0.0
    %183 = vmatpush2.xpose.msra.mxu0 0.0
    %184 = vmatprep.subr.mxu0 0.0
    %185 = vmatpush2.xpose.msra.mxu0 0.0
    %186 = vmatprep.subr.mxu0 0.0
    %187 = vmatpush2.xpose.msra.mxu0 0.0
    %188 = vmatprep.subr.mxu0 0.0
    %189 = vmatpush2.xpose.msra.mxu0 0.0
    %190 = vmatprep.subr.mxu0 0.0
    %191 = vmatpush2.xpose.msra.mxu0 0.0
    %192 = vmatprep.subr.mxu0 0.0
    %193 = vmatpush2.xpose.msra.mxu0 0.0
    %194 = vmatprep.subr.mxu0 0.0
    %195 = vmatpush2.xpose.msra.mxu0 0.0
    %196 = vmatprep.subr.mxu0 0.0
    %197 = vmatpush2.xpose.msra.mxu0 0.0
    %198 = vmatprep.subr.mxu0 0.0
    %199 = vmatpush2.xpose.msra.mxu0 0.0
    %200 = vmatprep.subr.mxu0 0.0
    %201 = vmatpush2.xpose.msra.mxu0 0.0
    %202 = vmatprep.subr.mxu0 0.0
    %203 = vmatpush2.xpose.msra.mxu0 0.0
    %204 = vmatprep.subr.mxu0 0.0
    %205 = vmatpush2.xpose.msra.mxu0 0.0
    %206 = vmatprep.subr.mxu0 0.0
    %207 = vmatpush2.xpose.msra.mxu0 0.0
    %208 = vmatprep.subr.mxu0 0.0
    %209 = vmatpush2.xpose.msra.mxu0 0.0
    %210 = vmatprep.subr.mxu0 0.0
    %211 = vmatpush2.xpose.msra.mxu0 0.0
    %212 = vmatprep.subr.mxu0 0.0
    %213 = vmatpush2.xpose.msra.mxu0 0.0
    %214 = vmatprep.mubr.f32.mxu0 0.0
    %215 = vmatmul.mubr.f32.gmra.mxu0 %v91
    %v216 = vpop.f32.mrf.mxu0
    %v217 = vadd.f32 %v72, %v216
    %v218 = vpop.f32.mrf.mxu0
    %219 = vmatprep.mubr.f32.mxu0 0.0
    %220 = vmatmul.mubr.f32.gmra.mxu0 %v94
    %v221 = vpop.f32.mrf.mxu0
    %v222 = vadd.f32 %v77, %v221
    %v223 = vpop.f32.mrf.mxu0
    %224 = vmatprep.mubr.f32.mxu0 0.0
    %225 = vmatmul.mubr.f32.gmra.mxu0 %v97
    %v226 = vpop.f32.mrf.mxu0
    %v227 = vadd.f32 %v82, %v226
    %v228 = vpop.f32.mrf.mxu0
    %229 = vmatprep.mubr.f32.mxu0 0.0
    %230 = vmatmul.mubr.f32.gmra.mxu0 %v100
    %v231 = vpop.f32.mrf.mxu0
    %v232 = vadd.f32 %v87, %v231
    %v233 = vpop.f32.mrf.mxu0
    %234 = vdwg.mxu0
    %v235 = vmul.f32 %v217, 0.01
    %v236 = vmul.f32 %v222, 0.01
    %v237 = vmul.f32 %v227, 0.01
    %v238 = vmul.f32 %v232, 0.01
    %v239 = vmax.f32 %v217, %v235
    %v240 = vmax.f32 %v222, %v236
    %v241 = vmax.f32 %v227, %v237
    %v242 = vmax.f32 %v232, %v238
    %243 = vadd.xlane.f32.xlu0 %v239
    %v244 = vpop.xlane.xlu0 %243
    %245 = vadd.xlane.f32.xlu0 %v240
    %v246 = vpop.xlane.xlu0 %245
    %247 = vadd.xlane.f32.xlu0 %v241
    %v248 = vpop.xlane.xlu0 %247
    %249 = vadd.xlane.f32.xlu0 %v242
    %v250 = vpop.xlane.xlu0 %249
    %v251 = vmul.f32 %v244, 0.0078125
    %v252 = vmul.f32 %v246, 0.0078125
    %v253 = vmul.f32 %v248, 0.0078125
    %v254 = vmul.f32 %v250, 0.0078125
    %v255 = vmul.f32 %v239, %v239
    %v256 = vmul.f32 %v240, %v240
    %v257 = vmul.f32 %v241, %v241
    %v258 = vmul.f32 %v242, %v242
    %259 = vadd.xlane.f32.xlu0 %v255
    %v260 = vpop.xlane.xlu0 %259
    %261 = vadd.xlane.f32.xlu0 %v256
    %v262 = vpop.xlane.xlu0 %261
    %263 = vadd.xlane.f32.xlu0 %v257
    %v264 = vpop.xlane.xlu0 %263
    %265 = vadd.xlane.f32.xlu0 %v258
    %v266 = vpop.xlane.xlu0 %265
    %v267 = vmul.f32 %v260, 0.0078125
    %v268 = vmul.f32 %v262, 0.0078125
    %v269 = vmul.f32 %v264, 0.0078125
    %v270 = vmul.f32 %v266, 0.0078125
    %v271 = vmul.f32 %v251, %v251
    %v272 = vmul.f32 %v252, %v252
    %v273 = vmul.f32 %v253, %v253
    %v274 = vmul.f32 %v254, %v254
    %v275 = vsub.f32 %v267, %v271
    %v276 = vsub.f32 %v268, %v272
    %v277 = vsub.f32 %v269, %v273
    %v278 = vsub.f32 %v270, %v274
    %v279 = vsub.f32 %v239, %v251
    %v280 = vsub.f32 %v240, %v252
    %v281 = vsub.f32 %v241, %v253
    %v282 = vsub.f32 %v242, %v254
    %v283 = vadd.f32 %v275, 1e-05
    %v284 = vadd.f32 %v276, 1e-05
    %v285 = vadd.f32 %v277, 1e-05
    %v286 = vadd.f32 %v278, 1e-05
    %v287 = vrsqrt.pop %v283
    %v288 = vrsqrt.pop %v284
    %v289 = vrsqrt.pop %v285
    %v290 = vrsqrt.pop %v286
    %v291 = vmul.f32 %v279, %v287
    %v292 = vmul.f32 %v280, %v288
    %v293 = vmul.f32 %v281, %v289
    %v294 = vmul.f32 %v282, %v290
    %v295 = vld [vmem:[%s4] sm:$0xff]
    %v296 = vld [vmem:[%s4 + $0x8] sm:$0xff]
    %v297 = vld [vmem:[%s4 + $0x10] sm:$0xff]
    %v298 = vld [vmem:[%s4 + $0x18] sm:$0xff]
    %v299 = vld [vmem:[%s5] sm:$0xff]
    %v300 = vld [vmem:[%s5 + $0x8] sm:$0xff]
    %v301 = vld [vmem:[%s5 + $0x10] sm:$0xff]
    %v302 = vld [vmem:[%s5 + $0x18] sm:$0xff]
    %304 = vset.pattern.permute.xlu0 0
    %305 = vperm.xlu0 %304, %v299
    %v306 = vpop.permute.xlu0 %305
    %309 = vset.pattern.permute.xlu0 0
    %310 = vperm.xlu0 %309, %v300
    %v311 = vpop.permute.xlu0 %310
    %314 = vset.pattern.permute.xlu0 0
    %315 = vperm.xlu0 %314, %v301
    %v316 = vpop.permute.xlu0 %315
    %319 = vset.pattern.permute.xlu0 0
    %320 = vperm.xlu0 %319, %v302
    %v321 = vpop.permute.xlu0 %320
    %vm323 = vcmask 261120
    %v325 = vsel %vm323, %v295, 0
    %v328 = vsel %vm323, %v296, 0
    %v331 = vsel %vm323, %v297, 0
    %v334 = vsel %vm323, %v298, 0
    %336 = vmatprep.subr.mxu0 0.0
    %337 = vmatpush1.msra.mxu0 0.0
    %338 = vmatprep.subr.mxu0 0.0
    %339 = vmatpush1.msra.mxu0 0.0
    %340 = vmatprep.subr.mxu0 0.0
    %341 = vmatpush1.msra.mxu0 0.0
    %342 = vmatprep.subr.mxu0 0.0
    %343 = vmatpush1.msra.mxu0 0.0
    %344 = vmatprep.subr.mxu0 0.0
    %345 = vmatpush1.msra.mxu0 0.0
    %346 = vmatprep.subr.mxu0 0.0
    %347 = vmatpush1.msra.mxu0 0.0
    %348 = vmatprep.subr.mxu0 0.0
    %349 = vmatpush1.msra.mxu0 0.0
    %350 = vmatprep.subr.mxu0 0.0
    %351 = vmatpush1.msra.mxu0 0.0
    %352 = vmatprep.subr.mxu0 0.0
    %353 = vmatpush1.msra.mxu0 0.0
    %354 = vmatprep.subr.mxu0 0.0
    %355 = vmatpush1.msra.mxu0 0.0
    %356 = vmatprep.subr.mxu0 0.0
    %357 = vmatpush1.msra.mxu0 0.0
    %358 = vmatprep.subr.mxu0 0.0
    %359 = vmatpush1.msra.mxu0 0.0
    %360 = vmatprep.subr.mxu0 0.0
    %361 = vmatpush1.msra.mxu0 %v294
    %362 = vmatprep.subr.mxu0 0.0
    %363 = vmatpush1.msra.mxu0 %v293
    %364 = vmatprep.subr.mxu0 0.0
    %365 = vmatpush1.msra.mxu0 %v292
    %366 = vmatprep.subr.mxu0 0.0
    %367 = vmatpush1.msra.mxu0 %v291
    %368 = vmatprep.subr.mxu0 0.0
    %369 = vmatpush2.msra.mxu0 0.0
    %370 = vmatprep.subr.mxu0 0.0
    %371 = vmatpush2.msra.mxu0 0.0
    %372 = vmatprep.subr.mxu0 0.0
    %373 = vmatpush2.msra.mxu0 0.0
    %374 = vmatprep.subr.mxu0 0.0
    %375 = vmatpush2.msra.mxu0 0.0
    %376 = vmatprep.subr.mxu0 0.0
    %377 = vmatpush2.msra.mxu0 0.0
    %378 = vmatprep.subr.mxu0 0.0
    %379 = vmatpush2.msra.mxu0 0.0
    %380 = vmatprep.subr.mxu0 0.0
    %381 = vmatpush2.msra.mxu0 0.0
    %382 = vmatprep.subr.mxu0 0.0
    %383 = vmatpush2.msra.mxu0 0.0
    %384 = vmatprep.subr.mxu0 0.0
    %385 = vmatpush2.msra.mxu0 0.0
    %386 = vmatprep.subr.mxu0 0.0
    %387 = vmatpush2.msra.mxu0 0.0
    %388 = vmatprep.subr.mxu0 0.0
    %389 = vmatpush2.msra.mxu0 0.0
    %390 = vmatprep.subr.mxu0 0.0
    %391 = vmatpush2.msra.mxu0 0.0
    %392 = vmatprep.subr.mxu0 0.0
    %393 = vmatpush2.msra.mxu0 0.0
    %394 = vmatprep.subr.mxu0 0.0
    %395 = vmatpush2.msra.mxu0 0.0
    %396 = vmatprep.subr.mxu0 0.0
    %397 = vmatpush2.msra.mxu0 0.0
    %398 = vmatprep.subr.mxu0 0.0
    %399 = vmatpush2.msra.mxu0 0.0
    %400 = vmatprep.mubr.f32.mxu0 0.0
    %401 = vmatmul.mubr.f32.gmra.mxu0 %v325
    %v402 = vpop.f32.mrf.mxu0
    %v403 = vadd.f32 %v306, %v402
    %v404 = vpop.f32.mrf.mxu0
    %405 = vmatprep.mubr.f32.mxu0 0.0
    %406 = vmatmul.mubr.f32.gmra.mxu0 %v328
    %v407 = vpop.f32.mrf.mxu0
    %v408 = vadd.f32 %v311, %v407
    %v409 = vpop.f32.mrf.mxu0
    %410 = vmatprep.mubr.f32.mxu0 0.0
    %411 = vmatmul.mubr.f32.gmra.mxu0 %v331
    %v412 = vpop.f32.mrf.mxu0
    %v413 = vadd.f32 %v316, %v412
    %v414 = vpop.f32.mrf.mxu0
    %415 = vmatprep.mubr.f32.mxu0 0.0
    %416 = vmatmul.mubr.f32.gmra.mxu0 %v334
    %v417 = vpop.f32.mrf.mxu0
    %v418 = vadd.f32 %v321, %v417
    %v419 = vpop.f32.mrf.mxu0
    %420 = vdwg.mxu0
    %v421 = vmul.f32 %v403, 0.01
    %v422 = vmul.f32 %v408, 0.01
    %v423 = vmul.f32 %v413, 0.01
    %v424 = vmul.f32 %v418, 0.01
    %v425 = vmax.f32 %v403, %v421
    %v426 = vmax.f32 %v408, %v422
    %v427 = vmax.f32 %v413, %v423
    %v428 = vmax.f32 %v418, %v424
    %429 = vadd.xlane.f32.xlu0 %v425
    %v430 = vpop.xlane.xlu0 %429
    %431 = vadd.xlane.f32.xlu0 %v426
    %v432 = vpop.xlane.xlu0 %431
    %433 = vadd.xlane.f32.xlu0 %v427
    %v434 = vpop.xlane.xlu0 %433
    %435 = vadd.xlane.f32.xlu0 %v428
    %v436 = vpop.xlane.xlu0 %435
    %v437 = vmul.f32 %v430, 0.0078125
    %v438 = vmul.f32 %v432, 0.0078125
    %v439 = vmul.f32 %v434, 0.0078125
    %v440 = vmul.f32 %v436, 0.0078125
    %v441 = vmul.f32 %v425, %v425
    %v442 = vmul.f32 %v426, %v426
    %v443 = vmul.f32 %v427, %v427
    %v444 = vmul.f32 %v428, %v428
    %445 = vadd.xlane.f32.xlu0 %v441
    %v446 = vpop.xlane.xlu0 %445
    %447 = vadd.xlane.f32.xlu0 %v442
    %v448 = vpop.xlane.xlu0 %447
    %449 = vadd.xlane.f32.xlu0 %v443
    %v450 = vpop.xlane.xlu0 %449
    %451 = vadd.xlane.f32.xlu0 %v444
    %v452 = vpop.xlane.xlu0 %451
    %v453 = vmul.f32 %v446, 0.0078125
    %v454 = vmul.f32 %v448, 0.0078125
    %v455 = vmul.f32 %v450, 0.0078125
    %v456 = vmul.f32 %v452, 0.0078125
    %v457 = vmul.f32 %v437, %v437
    %v458 = vmul.f32 %v438, %v438
    %v459 = vmul.f32 %v439, %v439
    %v460 = vmul.f32 %v440, %v440
    %v461 = vsub.f32 %v453, %v457
    %v462 = vsub.f32 %v454, %v458
    %v463 = vsub.f32 %v455, %v459
    %v464 = vsub.f32 %v456, %v460
    %v465 = vsub.f32 %v425, %v437
    %v466 = vsub.f32 %v426, %v438
    %v467 = vsub.f32 %v427, %v439
    %v468 = vsub.f32 %v428, %v440
    %v469 = vadd.f32 %v461, 1e-05
    %v470 = vadd.f32 %v462, 1e-05
    %v471 = vadd.f32 %v463, 1e-05
    %v472 = vadd.f32 %v464, 1e-05
    %v473 = vrsqrt.pop %v469
    %v474 = vrsqrt.pop %v470
    %v475 = vrsqrt.pop %v471
    %v476 = vrsqrt.pop %v472
    %v477 = vmul.f32 %v465, %v473
    %v478 = vmul.f32 %v466, %v474
    %v479 = vmul.f32 %v467, %v475
    %v480 = vmul.f32 %v468, %v476
    %v481 = vld [vmem:[%s6] sm:$0xff]
    %v482 = vld [vmem:[%s6 + $0x8] sm:$0xff]
    %v483 = vld [vmem:[%s6 + $0x10] sm:$0xff]
    %v484 = vld [vmem:[%s6 + $0x18] sm:$0xff]
    %v485 = vld [vmem:[#allocation2] sm:$0x1]
    %487 = vset.pattern.permute.xlu0 0
    %488 = vperm.xlu0 %487, %v481
    %v489 = vpop.permute.xlu0 %488
    %492 = vset.pattern.permute.xlu0 0
    %493 = vperm.xlu0 %492, %v482
    %v494 = vpop.permute.xlu0 %493
    %497 = vset.pattern.permute.xlu0 0
    %498 = vperm.xlu0 %497, %v483
    %v499 = vpop.permute.xlu0 %498
    %502 = vset.pattern.permute.xlu0 0
    %503 = vperm.xlu0 %502, %v484
    %v504 = vpop.permute.xlu0 %503
    %v506 = vmul.f32 %v477, %v489
    %v507 = vmul.f32 %v478, %v494
    %v508 = vmul.f32 %v479, %v499
    %v509 = vmul.f32 %v480, %v504
    %v510 = vadd.f32 %v506, %v507
    %v511 = vadd.f32 %v510, %v508
    %v512 = vadd.f32 %v511, %v509
    %v513 = vrot.slane %v512, 4
    %v514 = vadd.f32 %v512, %v513
    %v515 = vrot.slane %v514, 2
    %v516 = vadd.f32 %v514, %v515
    %v517 = vrot.slane %v516, 1
    %v518 = vadd.f32 %v516, %v517
    %520 = vset.pattern.permute.xlu0 0
    %521 = vperm.xlu0 %520, %v485
    %v522 = vpop.permute.xlu0 %521
    %v524 = vlaneseq
    %v525 = vshrl.u32 %v524, 7
    %v526 = vsub.s32 0, %v525
    %v527 = vrot.slane %v522, %v526
    %v528 = vadd.f32 %v518, %v527
    %s529 = sld [smem:[#allocation3]]
    %s530 = sld [smem:[#allocation3 + $0x1]]
    %v531 = vstv %s529
    %v532 = vmax.f32 %v531, %v528
    %v533 = vstv %s530
    %v534 = vmin.f32 %v533, %v532
    %535 = vst [vmem:[#allocation6] sm:$0x1] %v534
    // Predicated region
    $region38: #{tpu_custom_call.1} parent=1 // pred_check
      _
    $region39: #{tpu_custom_call.1} parent=1 // pred_check_branch
      %537 = sbr.rel (0) target = $region41
    $region40: #{tpu_custom_call.1} parent=1 // pred_region
      %s539 = ssub.s32 16, 16
      %540 = vsyncadd [#allocation4], %s539
      %s542 = sshll.u32 [#allocation6], 4
      %s543 = int_to_ptr.vmem [resolvable:$true] %s542
      %545 = dma.vmem_to_hbm [thread:$0]  %s543, 16, %s8, [#allocation4]
    $region41: #{tpu_custom_call.1} parent=1 // pred_fallthru
      _
    // Predicated region
    $region42: #{tpu_custom_call.1} parent=1 // pred_check
      _
    $region43: #{tpu_custom_call.1} parent=1 // pred_check_branch
      %547 = sbr.rel (0) target = $region45
    $region44: #{tpu_custom_call.1} parent=1 // pred_region
      %548 = dma.done [#allocation4], 16
    $region45: #{tpu_custom_call.1} parent=1 // pred_fallthru
      _
    %549 = vsyncpa [#allocation4], 1
    %550 = vsyncpa [#allocation5], 1

</llo_original>
